<compile_context>
chip_gen: v6e
topology: v6e:2x2x1
jax: 0.10.0
libtpu: 0.0.40
codegen_flags: <defaults>
</compile_context>

<pallas_src>
import functools

import numpy as np

import jax
import jax.numpy as jnp
from jax.experimental import pallas as pl
from jax.experimental.pallas import tpu as pltpu

_VMEM_LIMIT = 32 * 1024 * 1024  # at/below the scoped default on v5e / v6e / v7x


def _round_up(x, m):
    return ((x + m - 1) // m) * m


# ---------------------------------------------------------------------------
# pltpu.roll direction probe (run once, outside jit)
# ---------------------------------------------------------------------------

def _roll_matches_numpy():
    """pltpu.roll is specified to match jnp.roll; probe once on-device so the
    im2col shift direction is provably right on this backend."""
    def k(x_ref, o_ref):
        o_ref[...] = pltpu.roll(x_ref[...], 1, axis=1)

    x = jnp.arange(8 * 128, dtype=jnp.float32).reshape(8, 128)
    y = pl.pallas_call(k, out_shape=jax.ShapeDtypeStruct((8, 128), jnp.float32))(x)
    return bool(jnp.array_equal(y, jnp.roll(x, 1, axis=1)))


# ---------------------------------------------------------------------------
# Fused LeNet kernel
# ---------------------------------------------------------------------------

def _make_lenet_kernel(*, B, add_layers, L1, Wg1, LP2, Wg2, roll_like_numpy):
    """Builds the single fused kernel.

    B          : batch size
    add_layers : number of extra 3x3 'same' conv layers
    L1         : per-image lane count of the input grid (Wg1*Wg1)
    Wg1        : input grid width (32)
    LP2        : per-image padded lane count of the 14x14 grid (256)
    Wg2        : second grid width (14)
    """

    def tap(v, d):
        """out[:, p] = v[:, (p + d) mod L]  (static d, circular lane shift)."""
        L = v.shape[-1]
        s = (-d) % L if roll_like_numpy else d % L
        return v if s == 0 else pltpu.roll(v, s, axis=1)

    def kernel(*refs):
        x_ref, c1w_ref, c1b_ref, sel1_ref = refs[:4]
        pos = 4
        add_w, add_b = [], []
        for _ in range(add_layers):
            add_w.append(refs[pos])
            add_b.append(refs[pos + 1])
            pos += 2
        mask_ref = refs[pos]
        pos += 1
        c2w_ref, c2b_ref = refs[pos], refs[pos + 1]
        pos += 2
        g1_ref, b1_ref, w2_ref, b2_ref, w3_ref, b3_ref = refs[pos:pos + 6]
        o_ref = refs[pos + 6]

        f32 = jnp.float32

        # ---- fold the batch onto the lane axis: (Cp, B*L1), channel-major ----
        x = jnp.concatenate([x_ref[b] for b in range(B)], axis=1)

        # ---- conv1: 5x5 valid + bias + ReLU + 2x2/2 max-pool -----------------
        taps = [tap(x, i * Wg1 + j) for i in range(5) for j in range(5)]
        patches = jnp.concatenate(taps, axis=0)                    # (25*Cp, B*L1)
        acc = jnp.dot(c1w_ref[...], patches, preferred_element_type=f32)
        acc = jnp.maximum(acc + c1b_ref[...], 0.0)
        acc = jnp.maximum(acc, tap(acc, 1))                        # max over w,w+1
        acc = jnp.maximum(acc, tap(acc, Wg1))                      # max over h,h+1
        # crop + stride-2 compaction (one-hot f32 matmul), per image segment
        act = jnp.concatenate(
            [jnp.dot(acc[:, b * L1:(b + 1) * L1], sel1_ref[...],
                     preferred_element_type=f32) for b in range(B)],
            axis=1)                                                # (Cp, B*LP2)

        # ---- additional 3x3 'same' convs + bias + ReLU -----------------------
        if add_layers:
            mask = jnp.concatenate([mask_ref[...]] * B, axis=1)    # (9*Cp, B*LP2)
            for l in range(add_layers):
                taps = [tap(act, (i - 1) * Wg2 + (j - 1))
                        for i in range(3) for j in range(3)]
                pt = jnp.concatenate(taps, axis=0) * mask          # one masked pass
                z = jnp.dot(add_w[l][...], pt, preferred_element_type=f32)
                act = jnp.maximum(z + add_b[l][...], 0.0)

        # ---- conv2: 5x5 valid + bias + ReLU + 2x2/2 max-pool -----------------
        taps = [tap(act, i * Wg2 + j) for i in range(5) for j in range(5)]
        patches = jnp.concatenate(taps, axis=0)                    # (25*Cp, B*LP2)
        acc = jnp.dot(c2w_ref[...], patches, preferred_element_type=f32)
        acc = jnp.maximum(acc + c2b_ref[...], 0.0)
        acc = jnp.maximum(acc, tap(acc, 1))
        acc = jnp.maximum(acc, tap(acc, Wg2))                      # (16, B*LP2)

        # ---- pool-select + NCHW flatten + fc1 (all fused in g1), fc2, fc3, mean
        oc2 = acc.shape[0]
        out = jnp.zeros((1, o_ref.shape[-1]), f32)
        for b in range(B):
            seg = acc[:, b * LP2:(b + 1) * LP2]                    # (16, LP2)
            row = jnp.concatenate([seg[c:c + 1, :] for c in range(oc2)], axis=1)
            h = jnp.dot(row, g1_ref[...], preferred_element_type=f32)
            h = jnp.maximum(h + b1_ref[...], 0.0)
            h = jnp.dot(h, w2_ref[...], preferred_element_type=f32)
            h = jnp.maximum(h + b2_ref[...], 0.0)
            out = out + jnp.dot(h, w3_ref[...],
                                preferred_element_type=f32) + b3_ref[...]
        o_ref[...] = out * (1.0 / B)                               # mean over batch

    return kernel


# ---------------------------------------------------------------------------
# pallas_call wrapper
# ---------------------------------------------------------------------------

def linear_out_lenet_forward(prep, x, *, additional_layers, roll_like_numpy):
    B, C, H, W = x.shape
    assert H == W
    L1 = H * W
    Cp = prep["c1_w"].shape[1] // 25
    LP2 = prep["sel1"].shape[1]
    H2 = (H - 4) // 2
    NO = prep["fc3_b"].shape[1]

    # pad channels to the sublane count; NCHW row-major flatten is free
    xp = jnp.pad(x, ((0, 0), (0, Cp - C), (0, 0), (0, 0))).reshape(B, Cp, L1)

    inputs = [xp, prep["c1_w"], prep["c1_b"], prep["sel1"]]
    for l in range(additional_layers):
        inputs += [prep[f"a{l}_w"], prep[f"a{l}_b"]]
    inputs += [prep["same_mask"], prep["c2_w"], prep["c2_b"], prep["g1"],
               prep["fc1_b"], prep["fc2_w"], prep["fc2_b"],
               prep["fc3_w"], prep["fc3_b"]]

    def full_spec(a):
        if a.ndim == 3:
            return pl.BlockSpec(a.shape, lambda i: (0, 0, 0))
        return pl.BlockSpec(a.shape, lambda i: (0, 0))

    kernel = _make_lenet_kernel(
        B=B, add_layers=additional_layers, L1=L1, Wg1=W, LP2=LP2, Wg2=H2,
        roll_like_numpy=roll_like_numpy)

    return pl.pallas_call(
        kernel,
        out_shape=jax.ShapeDtypeStruct((1, NO), jnp.float32),
        grid=(1,),
        in_specs=[full_spec(a) for a in inputs],
        out_specs=pl.BlockSpec((1, NO), lambda i: (0, 0)),
        compiler_params=pltpu.CompilerParams(
            dimension_semantics=("arbitrary",),
            vmem_limit_bytes=_VMEM_LIMIT),
    )(*inputs)


# ---------------------------------------------------------------------------
# Constant builders (numpy, built once in prepare())
# ---------------------------------------------------------------------------

def _reorder_conv_weight(w, cp_in, ocp):
    """(OC, C, KH, KW) torch layout -> (OCp, KH*KW*Cp) tap-major, zero-padded."""
    OC, C, KH, KW = w.shape
    wt = jnp.transpose(w, (0, 2, 3, 1))                      # (OC, KH, KW, C)
    wt = jnp.pad(wt, ((0, ocp - OC), (0, 0), (0, 0), (0, cp_in - C)))
    return wt.reshape(ocp, KH * KW * cp_in).astype(jnp.float32)


def _pad_bias(b, ocp):
    return jnp.pad(b, (0, ocp - b.shape[0])).reshape(ocp, 1).astype(jnp.float32)


def _pool_select_matrix(Hp, K, lp_out):
    """(Hp*Hp, lp_out) one-hot: crops the valid KxK conv output on the Hp x Hp
    lane grid and compacts the stride-2 pool origins into a lane-dense segment."""
    oh = (Hp - (K - 1)) // 2
    assert oh * oh <= lp_out
    dmax = (K - 1) * (Hp + 1)                 # furthest conv tap offset
    S = np.zeros((Hp * Hp, lp_out), np.float32)
    for h in range(oh):
        for w in range(oh):
            src = 2 * h * Hp + 2 * w
            # the 2x2 pool window and every conv tap feeding it must stay inside
            # this image's lane segment (no circular-shift wrap contamination)
            assert src + (Hp + 1) + dmax <= Hp * Hp - 1, "pool/crop would wrap"
            S[src, h * oh + w] = 1.0
    return S


def _same_conv_mask(H, K, cp, lp):
    """(K*K*cp, lp) multiplier zeroing out-of-image taps of the pad=K//2 'same'
    conv (and the lane-padding region), pre-expanded over the channel block."""
    y = np.arange(H * H) // H
    x = np.arange(H * H) % H
    r = K // 2
    m = np.zeros((K * K * cp, lp), np.float32)
    t = 0
    for i in range(K):
        for j in range(K):
            di, dj = i - r, j - r
            ok = ((y + di >= 0) & (y + di < H) & (x + dj >= 0) & (x + dj < H))
            m[t * cp:(t + 1) * cp, :H * H] = ok.astype(np.float32)[None, :]
            t += 1
    return m


def _fc1_pool_flatten_matrix(fc1_w, oc2, ohp, wg, lp):
    """Folds conv2's crop/stride-2 pool selection AND the NCHW flatten into the
    fc1 weight: returns (oc2*lp, hidden) so that  row @ G == fc1(flatten(pooled))
    with row = concat_c(channel-c lane segment)."""
    nh = fc1_w.shape[0]
    Wr = fc1_w.reshape(nh, oc2, ohp, ohp)
    G = np.zeros((oc2, lp, nh), np.float32)
    dmax = 4 * (wg + 1)
    for h in range(ohp):
        for w in range(ohp):
            src = 2 * h * wg + 2 * w
            assert src + (wg + 1) + dmax <= wg * wg - 1, "pool/crop would wrap"
            G[:, src, :] = Wr[:, :, h, w].T
    return G.reshape(oc2 * lp, nh)


# ---------------------------------------------------------------------------
# Parameter init / preparation
# ---------------------------------------------------------------------------

def _uniform(key, shape, fan_in):
    bound = 1.0 / (float(fan_in) ** 0.5)
    return jax.random.uniform(key, shape, jnp.float32, -bound, bound)


def init_params(key, in_channels, args_channels, additional_layers):
    params = {}
    keys = iter(jax.random.split(key, 2 * (2 + additional_layers + 3)))

    fan = in_channels * 25
    params["conv1_w"] = _uniform(next(keys), (args_channels, in_channels, 5, 5), fan)
    params["conv1_b"] = _uniform(next(keys), (args_channels,), fan)

    for l in range(additional_layers):
        fan = args_channels * 9
        params[f"add{l}_w"] = _uniform(next(keys),
                                       (args_channels, args_channels, 3, 3), fan)
        params[f"add{l}_b"] = _uniform(next(keys), (args_channels,), fan)

    fan = args_channels * 25
    params["conv2_w"] = _uniform(next(keys), (16, args_channels, 5, 5), fan)
    params["conv2_b"] = _uniform(next(keys), (16,), fan)

    params["fc1_w"] = _uniform(next(keys), (120, 400), 400)
    params["fc1_b"] = _uniform(next(keys), (120,), 400)
    params["fc2_w"] = _uniform(next(keys), (84, 120), 120)
    params["fc2_b"] = _uniform(next(keys), (84,), 120)
    params["fc3_w"] = _uniform(next(keys), (10, 84), 84)
    params["fc3_b"] = _uniform(next(keys), (10,), 84)
    return params


def prepare(params, additional_layers, spatial):
    """One-time conversion of torch-layout params into kernel-ready, sublane-padded
    / lane-dense f32 constants (no per-call layout work)."""
    c_in = params["conv1_w"].shape[1]
    a_ch = params["conv1_w"].shape[0]
    oc2 = params["conv2_w"].shape[0]            # 16
    cp = _round_up(max(c_in, a_ch), 8)          # padded channel count (f32 sublanes)
    H1 = spatial                                # 32
    H2 = (H1 - 4) // 2                          # 14
    OH2 = (H2 - 4) // 2                         # 5
    LP2 = _round_up(H2 * H2, 128)               # 256

    prep = {
        "c1_w": _reorder_conv_weight(params["conv1_w"], cp, cp),
        "c1_b": _pad_bias(params["conv1_b"], cp),
        "sel1": jnp.asarray(_pool_select_matrix(H1, 5, LP2), jnp.float32),
        "same_mask": jnp.asarray(_same_conv_mask(H2, 3, cp, LP2), jnp.float32),
        "c2_w": _reorder_conv_weight(params["conv2_w"], cp, oc2),
        "c2_b": params["conv2_b"].reshape(-1, 1).astype(jnp.float32),
        "g1": jnp.asarray(
            _fc1_pool_flatten_matrix(np.asarray(params["fc1_w"], np.float32),
                                     oc2, OH2, H2, LP2), jnp.float32),
        "fc1_b": params["fc1_b"].reshape(1, -1),
        "fc2_w": params["fc2_w"].T,
        "fc2_b": params["fc2_b"].reshape(1, -1),
        "fc3_w": params["fc3_w"].T,
        "fc3_b": params["fc3_b"].reshape(1, -1),
    }
    for l in range(additional_layers):
        prep[f"a{l}_w"] = _reorder_conv_weight(params[f"add{l}_w"], cp, cp)
        prep[f"a{l}_b"] = _pad_bias(params[f"add{l}_b"], cp)
    return prep


# ---------------------------------------------------------------------------
# Pure-JAX reference of the same (assumed) topology
# ---------------------------------------------------------------------------

def reference_forward(params, x, additional_layers):
    def conv_relu(y, w, b, padding):
        z = jax.lax.conv_general_dilated(
            y, w, window_strides=(1, 1), padding=padding,
            dimension_numbers=("NCHW", "OIHW", "NCHW"))
        return jnp.maximum(z + b.reshape(1, -1, 1, 1), 0.0)

    def maxpool2(y):
        return jax.lax.reduce_window(y, -jnp.inf, jax.lax.max,
                                     (1, 1, 2, 2), (1, 1, 2, 2), "VALID")

    y = maxpool2(conv_relu(x, params["conv1_w"], params["conv1_b"], "VALID"))
    for l in range(additional_layers):
        y = conv_relu(y, params[f"add{l}_w"], params[f"add{l}_b"], "SAME")
    y = maxpool2(conv_relu(y, params["conv2_w"], params["conv2_b"], "VALID"))
    f = y.reshape(y.shape[0], -1)
    h = jnp.maximum(f @ params["fc1_w"].T + params["fc1_b"], 0.0)
    h = jnp.maximum(h @ params["fc2_w"].T + params["fc2_b"], 0.0)
    h = h @ params["fc3_w"].T + params["fc3_b"]
    return jnp.mean(h, axis=0, keepdims=True)


# ---------------------------------------------------------------------------
# main
# ---------------------------------------------------------------------------

if __name__ == "__main__":
    in_channels = 3
    args_channels = 6
    additional_layers = 1
    batch = 2
    spatial = 32  # classic LeNet input size so fc1 sees 16*5*5 features

    key = jax.random.PRNGKey(0)
    k_params, k_x = jax.random.split(key)
    params = init_params(k_params, in_channels, args_channels, additional_layers)
    prep = prepare(params, additional_layers, spatial)
    x = jax.random.normal(k_x, (batch, in_channels, spatial, spatial), jnp.float32)

    roll_like_numpy = _roll_matches_numpy()   # probe once, outside jit

    fwd = jax.jit(functools.partial(linear_out_lenet_forward,
                                    additional_layers=additional_layers,
                                    roll_like_numpy=roll_like_numpy))
    out = jax.block_until_ready(fwd(prep, x))

    assert out.shape == (1, 10), out.shape
    assert out.dtype == jnp.float32
    assert bool(jnp.all(jnp.isfinite(out)))

    # Correctness check against a pure-JAX/XLA reference of the same topology.
    ref = reference_forward(params, x, additional_layers)
    np.testing.assert_allclose(np.asarray(out), np.asarray(ref),
                               rtol=3e-2, atol=3e-2)
    print("KERNEL_OK")
</pallas_src>

<mosaic_0001>
module attributes {stable_mosaic.version = 11 : i64} {
  func.func @k(%arg0: memref<8x128xf32, #tpu.memory_space<vmem>>, %arg1: memref<8x128xf32, #tpu.memory_space<vmem>>) attributes {dimension_semantics = [], scalar_prefetch = 0 : i64, scratch_operands = 0 : i64, tpu.core_type = #tpu.core_type<tc>} {
    %c0 = arith.constant 0 : index
    %c0_0 = arith.constant 0 : index
    %0 = vector.load %arg0[%c0, %c0_0] : memref<8x128xf32, #tpu.memory_space<vmem>>, vector<8x128xf32>
    %c1_i32 = arith.constant 1 : i32
    %1 = tpu.dynamic_rotate %0 by %c1_i32 dim 1 : vector<8x128xf32>, i32 -> vector<8x128xf32>
    %c0_1 = arith.constant 0 : index
    %c0_2 = arith.constant 0 : index
    %2 = vector.load %arg1[%c0_1, %c0_2] : memref<8x128xf32, #tpu.memory_space<vmem>>, vector<8x128xf32>
    tpu.vector_store %arg1[%c0_1, %c0_2], %1 {strides = array<i32>} : memref<8x128xf32, #tpu.memory_space<vmem>>, vector<8x128xf32>,
    return
  }
}

</mosaic_0001>

<llo_original>
// kernel: tpu_custom_call.1
$region0: #{tpu_custom_call.1}
  #allocation0 [shape = 'u32[]', space=smem, size = 0x4, offset = 0x4, fixed_abs, tag = 'smem constant byte address 0x4 - core index']
  #allocation1 [shape = 'u32[144,128]{1,0:T(1,128)}', space=vmem, size = 0x12000, scoped, tag = 'internal scratch']
  %s0 = inlined_call_operand.hbm [shape: f32[8,128], index: 0, kind: input, shape index: {}]
  %s1 = inlined_call_operand.hbm [shape: f32[8,128], index: 1, kind: output, shape index: {}]
  %s2 = sld [smem:[#allocation0]]
  $region18: #{tpu_custom_call.1} parent=0
    _
  %s4 = ssub.s32 1, %s2
  %s5 = scalar_select 0, %s4, %s2
  $region1: #{tpu_custom_call.1} parent=0
    #allocation2 [shape = 'u8[4096]{0}', space=vmem, size = 0x1000, scoped, tag = 'input window, operand 0, single buffered']
    #allocation3 [shape = 's32[1]{0}', space=sflag, size = 0x4, scoped, tag = 'scoped memory for tpu_custom_call.1']
    #allocation4 [shape = 's32[1]{0}', space=sflag, size = 0x4, scoped, tag = 'scoped memory for tpu_custom_call.1']
    #allocation5 [shape = 'u8[4096]{0}', space=vmem, size = 0x1000, scoped, tag = 'output window, operand 0, single buffered']
    %6 = vsyncpa [#allocation3], 0
    %7 = vsyncpa [#allocation4], 0
    // Predicated region
    $region2: #{tpu_custom_call.1} parent=1 // pred_check
      _
    $region3: #{tpu_custom_call.1} parent=1 // pred_check_branch
      %9 = sbr.rel (0) target = $region5
    $region4: #{tpu_custom_call.1} parent=1 // pred_region
      %s11 = ssub.s32 128, 128
      %12 = vsyncadd [#allocation3], %s11
      %s14 = sshll.u32 [#allocation2], 4
      %s15 = int_to_ptr.vmem [resolvable:$true] %s14
      %17 = dma.hbm_to_vmem [thread:$0]  %s0, 128, %s15, [#allocation3]
    $region5: #{tpu_custom_call.1} parent=1 // pred_fallthru
      _
    // Predicated region
    $region6: #{tpu_custom_call.1} parent=1 // pred_check
      _
    $region7: #{tpu_custom_call.1} parent=1 // pred_check_branch
      %19 = sbr.rel (0) target = $region9
    $region8: #{tpu_custom_call.1} parent=1 // pred_region
      %20 = dma.done [#allocation3], 128
    $region9: #{tpu_custom_call.1} parent=1 // pred_fallthru
      _
    %v21 = vld [vmem:[#allocation2] sm:$0xff]
    %22 = vrot.lane.b32.xlu0 %v21, 1
    %v23 = vpop.permute.xlu0 %22
    %24 = vst [vmem:[#allocation5] sm:$0xff] %v23
    // Predicated region
    $region10: #{tpu_custom_call.1} parent=1 // pred_check
      _
    $region11: #{tpu_custom_call.1} parent=1 // pred_check_branch
      %26 = sbr.rel (0) target = $region13
    $region12: #{tpu_custom_call.1} parent=1 // pred_region
      %s28 = ssub.s32 128, 128
      %29 = vsyncadd [#allocation4], %s28
      %s31 = sshll.u32 [#allocation5], 4
      %s32 = int_to_ptr.vmem [resolvable:$true] %s31
      %34 = dma.vmem_to_hbm [thread:$0]  %s32, 128, %s1, [#allocation4]
    $region13: #{tpu_custom_call.1} parent=1 // pred_fallthru
      _
    // Predicated region
    $region14: #{tpu_custom_call.1} parent=1 // pred_check
      _
    $region15: #{tpu_custom_call.1} parent=1 // pred_check_branch
      %36 = sbr.rel (0) target = $region17
    $region16: #{tpu_custom_call.1} parent=1 // pred_region
      %37 = dma.done [#allocation4], 128
    $region17: #{tpu_custom_call.1} parent=1 // pred_fallthru
      _
    %38 = vsyncpa [#allocation3], 1
    %39 = vsyncpa [#allocation4], 1

</llo_original>
